<compile_context>
chip_gen: v7x
topology: tpu7x:2x2x1
jax: 0.10.0
libtpu: 0.0.40
codegen_flags: <defaults>
</compile_context>

<pallas_src>
import functools

import jax
import jax.numpy as jnp
from jax.experimental import pallas as pl
from jax.experimental.pallas import tpu as pltpu


def _round_up(a, m):
    return ((a + m - 1) // m) * m


def _choose_q_tile(n, max_tq=256):
    """Sublane-aligned query tile; N is padded up to a multiple of it."""
    return min(max_tq, _round_up(n, 8))


def _vmem_cap_bytes():
    try:
        return int(pltpu.get_tpu_info().vmem_capacity_bytes)
    except Exception:
        return 64 * 1024 * 1024  # conservative (v7x per-TC VMEM)


def bam_attn_kernel(xf_ref, wvk_ref, bvk_ref, wq_ref, bq_ref, o_ref,
                    v_sc, k_sc, *, Cp, Ckp, Tq, Np, N_real):
    """One (batch, q-tile) grid step.

    xf_ref : (Np, Cp)      bf16 pooled features, full (padded) sequence
    wvk_ref: (Cp, Cp+Ckp)  bf16 fused [Wv | Wk] (V first, 128-lane aligned split)
    bvk_ref: (1, Cp+Ckp)   f32  fused [bv | bk]
    wq_ref : (Cp, Ckp)     bf16 Wq * key_channel**-0.5  (scale folded in)
    bq_ref : (1, Ckp)      f32  bq * key_channel**-0.5
    o_ref  : (Tq, Cp)      output tile
    v_sc   : (Np, Cp)      bf16 VMEM scratch, cached per batch
    k_sc   : (Np, Ckp)     bf16 VMEM scratch, cached per batch
    """
    qi = pl.program_id(1)

    # --- per-batch: fused value/key 1x1-conv projection, cached in VMEM ------
    @pl.when(qi == 0)
    def _():
        xf = xf_ref[...]                                           # (Np, Cp) bf16
        vk = jnp.dot(xf, wvk_ref[...],
                     preferred_element_type=jnp.float32) + bvk_ref[...]
        v_sc[...] = vk[:, :Cp].astype(jnp.bfloat16)                # lane-aligned split
        k_sc[...] = vk[:, Cp:].astype(jnp.bfloat16)

    # --- per-tile: query projection (scale pre-folded into wq/bq) ------------
    q_start = pl.multiple_of(qi * Tq, Tq)
    xq = xf_ref[pl.ds(q_start, Tq), :]                             # (Tq, Cp) bf16
    q = jnp.dot(xq, wq_ref[...],
                preferred_element_type=jnp.float32) + bq_ref[...]  # (Tq, Ckp) f32

    # energy[i, j] = scale * <q_i, k_j>  (scale pre-folded), f32 accumulation.
    energy = jax.lax.dot_general(
        q.astype(jnp.bfloat16), k_sc[...],
        dimension_numbers=(((1,), (1,)), ((), ())),
        preferred_element_type=jnp.float32)                        # (Tq, Np)

    if Np > N_real:  # static: mask padded key columns out of the softmax
        col = jax.lax.broadcasted_iota(jnp.int32, (Tq, Np), 1)
        energy = jnp.where(col < N_real, energy, jnp.float32(-1e30))

    # Numerically-stable softmax over keys (f32; v5e has no bf16 VPU/EUP),
    # normalization deferred to the (Tq, Cp) output.
    m = jnp.max(energy, axis=-1, keepdims=True)
    p = jnp.exp(energy - m)                                        # (Tq, Np) f32
    l = jnp.sum(p, axis=-1, keepdims=True)                         # (Tq, 1)

    o_un = jnp.dot(p.astype(jnp.bfloat16), v_sc[...],
                   preferred_element_type=jnp.float32)             # (Tq, Cp)
    o = o_un * pl.reciprocal(l, approx=False)                      # exact; (Tq,1) is cheap
    o_ref[...] = o.astype(o_ref.dtype)


def bam_forward(x, params, ds):
    """x: (B, C, W, H) float32 NCHW, as in the PyTorch module."""
    B, C, W, H = x.shape
    Ck = C // 8
    w, h = W // ds, H // ds
    N = w * h
    scale = float(Ck) ** (-0.5)

    # Lane-dense padded channel dims (multiples of 128); padded sequence length.
    Cp = _round_up(C, 128)
    Ckp = _round_up(Ck, 128)
    Tq = _choose_q_tile(N)
    Np = _round_up(N, Tq)
    NQ = Np // Tq

    # --- host-side weight prep: fold scale, fuse V|K, zero-pad, cast bf16 ----
    wv = jnp.pad(params["wv"], ((0, Cp - C), (0, Cp - C)))
    wk = jnp.pad(params["wk"], ((0, Cp - C), (0, Ckp - Ck)))
    bv = jnp.pad(params["bv"], ((0, 0), (0, Cp - C)))
    bk = jnp.pad(params["bk"], ((0, 0), (0, Ckp - Ck)))
    w_vk = jnp.concatenate([wv, wk], axis=1).astype(jnp.bfloat16)   # (Cp, Cp+Ckp)
    b_vk = jnp.concatenate([bv, bk], axis=1).astype(jnp.float32)    # (1, Cp+Ckp)
    w_q = jnp.pad(params["wq"] * scale,
                  ((0, Cp - C), (0, Ckp - Ck))).astype(jnp.bfloat16)
    b_q = jnp.pad(params["bq"] * scale,
                  ((0, 0), (0, Ckp - Ck))).astype(jnp.float32)

    # --- AvgPool2d(ds) + NCHW -> (B, Np, Cp) bf16 channels-last layout glue ---
    xp = x.reshape(B, C, w, ds, h, ds).mean(axis=(3, 5))            # (B, C, w, h)
    xf = xp.transpose(0, 2, 3, 1).reshape(B, N, C)                  # (B, N, C)
    xf_pad = jnp.pad(xf.astype(jnp.bfloat16),
                     ((0, 0), (0, Np - N), (0, Cp - C)))            # (B, Np, Cp)

    kern = functools.partial(bam_attn_kernel,
                             Cp=Cp, Ckp=Ckp, Tq=Tq, Np=Np, N_real=N)

    # VMEM budget: double-buffered I/O + weights, bf16 v/k scratch, f32 temps.
    vmem_est = (
        2 * Np * Cp * 2                      # xf block (bf16, double-buffered)
        + 2 * Tq * Cp * 4                    # output block (f32, double-buffered)
        + 2 * (Cp * (Cp + Ckp) * 2 + (Cp + Ckp) * 4 + Cp * Ckp * 2 + Ckp * 4)
        + Np * (Cp + Ckp) * 2                # v/k bf16 scratch
        + Np * (Cp + Ckp) * 4                # vk f32 intermediate (qi == 0 only)
        + 2 * Tq * Np * 4                    # energy + p
        + Tq * (Ckp + Cp) * 4)               # q + o_un
    cap = _vmem_cap_bytes() - 16 * 1024 * 1024
    vmem_limit = int(max(16 * 1024 * 1024,
                         min(cap, max(32 * 1024 * 1024, int(1.5 * vmem_est)))))

    out_pad = pl.pallas_call(
        kern,
        out_shape=jax.ShapeDtypeStruct((B, Np, Cp), x.dtype),
        grid=(B, NQ),
        in_specs=[
            pl.BlockSpec((None, Np, Cp), lambda b, qi: (b, 0, 0)),   # full seq (Q/K/V src)
            pl.BlockSpec((Cp, Cp + Ckp), lambda b, qi: (0, 0)),      # fused [Wv|Wk] bf16
            pl.BlockSpec((1, Cp + Ckp), lambda b, qi: (0, 0)),       # fused [bv|bk]
            pl.BlockSpec((Cp, Ckp), lambda b, qi: (0, 0)),           # Wq (pre-scaled) bf16
            pl.BlockSpec((1, Ckp), lambda b, qi: (0, 0)),            # bq (pre-scaled)
        ],
        out_specs=pl.BlockSpec((None, Tq, Cp), lambda b, qi: (b, qi, 0)),
        scratch_shapes=[
            pltpu.VMEM((Np, Cp), jnp.bfloat16),                      # cached V
            pltpu.VMEM((Np, Ckp), jnp.bfloat16),                     # cached K
        ],
        compiler_params=pltpu.CompilerParams(
            # batch parallel (megacore); qi sequential so the per-batch V/K
            # scratch cache stays valid.
            dimension_semantics=("parallel", "arbitrary"),
            vmem_limit_bytes=vmem_limit),
    )(xf_pad, w_vk, b_vk, w_q, b_q)
    # TODO(synk): on v5e, if the per-batch (Np, Cp) refill shows up exposed in a
    # profile, bump the xf spec to pipeline_mode=pl.Buffered(3).

    # --- strip padding, back to NCHW at pooled res; nearest-upsample + residual
    #     add in plain JAX so XLA fuses broadcast + reshape + add ---------------
    out_nc = out_pad[:, :N, :C]
    out = out_nc.reshape(B, w, h, C).transpose(0, 3, 1, 2)          # (B, C, w, h)
    out_up = jnp.broadcast_to(out[:, :, :, None, :, None],
                              (B, C, w, ds, h, ds)).reshape(B, C, W, H)
    return out_up + x


def bam_reference(x, params, ds):
    """Pure-JAX f32 reference of the PyTorch forward, for the correctness check."""
    B, C, W, H = x.shape
    Ck = C // 8
    w, h = W // ds, H // ds
    N = w * h
    xp = x.reshape(B, C, w, ds, h, ds).mean(axis=(3, 5))
    xf = xp.transpose(0, 2, 3, 1).reshape(B, N, C)
    q = xf @ params["wq"] + params["bq"]
    k = xf @ params["wk"] + params["bk"]
    v = xf @ params["wv"] + params["bv"]
    energy = (float(Ck) ** -0.5) * jnp.einsum('bnc,bmc->bnm', q, k)
    attn = jax.nn.softmax(energy, axis=-1)
    o = jnp.einsum('bnm,bmc->bnc', attn, v)
    o = o.reshape(B, w, h, C).transpose(0, 3, 1, 2)
    o = jnp.repeat(jnp.repeat(o, ds, axis=2), ds, axis=3)
    return o + x


def init_params(key, C):
    """Deterministic synthetic 1x1-conv weights.  Torch conv weight (Cout,Cin,1,1)
    is stored here pre-transposed as (Cin, Cout) for the matmul formulation."""
    Ck = C // 8
    ks = jax.random.split(key, 6)
    return {
        "wq": 0.1 * jax.random.normal(ks[0], (C, Ck), jnp.float32),
        "bq": 0.1 * jax.random.normal(ks[1], (1, Ck), jnp.float32),
        "wk": 0.1 * jax.random.normal(ks[2], (C, Ck), jnp.float32),
        "bk": 0.1 * jax.random.normal(ks[3], (1, Ck), jnp.float32),
        "wv": 0.1 * jax.random.normal(ks[4], (C, C), jnp.float32),
        "bv": 0.1 * jax.random.normal(ks[5], (1, C), jnp.float32),
        # `gamma` exists in the torch __init__ but is unused in forward(); omitted.
    }


if __name__ == "__main__":
    B, C, W, H = 2, 16, 16, 16
    ds = 2   # pooled spatial = 8x8 -> N = 64

    key = jax.random.PRNGKey(0)
    kx, kp = jax.random.split(key)
    x = jax.random.normal(kx, (B, C, W, H), jnp.float32)
    params = init_params(kp, C)

    fwd = jax.jit(functools.partial(bam_forward, ds=ds))
    out = jax.block_until_ready(fwd(x, params))

    ref = bam_reference(x, params, ds)
    assert out.shape == (B, C, W, H)
    # bf16 MXU inputs: slightly looser tolerance than pure f32, still tight
    # enough to catch any semantic bug (outputs are O(1)).
    assert jnp.allclose(out, ref, atol=2e-2, rtol=2e-2), "mismatch vs reference"

    print("KERNEL_OK")
</pallas_src>

<mosaic_0001>
module attributes {stable_mosaic.version = 11 : i64} {
  func.func @bam_attn_kernel(%arg0: i32, %arg1: i32, %arg2: memref<1x64x128xbf16, #tpu.memory_space<vmem>>, %arg3: memref<128x256xbf16, #tpu.memory_space<vmem>>, %arg4: memref<1x256xf32, #tpu.memory_space<vmem>>, %arg5: memref<128x128xbf16, #tpu.memory_space<vmem>>, %arg6: memref<1x128xf32, #tpu.memory_space<vmem>>, %arg7: memref<1x64x128xf32, #tpu.memory_space<vmem>>, %arg8: memref<64x128xbf16, #tpu.memory_space<vmem>>, %arg9: memref<64x128xbf16, #tpu.memory_space<vmem>>) attributes {dimension_semantics = [#tpu.dimension_semantics<parallel>, #tpu.dimension_semantics<arbitrary>], iteration_bounds = array<i64: 2, 1>, scalar_prefetch = 0 : i64, scratch_operands = 2 : i64, tpu.core_type = #tpu.core_type<tc>, window_params = [{transform_indices = @transform_0, window_bounds = array<i64: 1, 64, 128>}, {pipeline_mode = #tpu.pipeline_mode<synchronous>, transform_indices = @transform_1, window_bounds = array<i64: 128, 256>}, {pipeline_mode = #tpu.pipeline_mode<synchronous>, transform_indices = @transform_2, window_bounds = array<i64: 1, 256>}, {pipeline_mode = #tpu.pipeline_mode<synchronous>, transform_indices = @transform_3, window_bounds = array<i64: 128, 128>}, {pipeline_mode = #tpu.pipeline_mode<synchronous>, transform_indices = @transform_4, window_bounds = array<i64: 1, 128>}, {transform_indices = @transform_5, window_bounds = array<i64: 1, 64, 128>}]} {
    %c0_i32 = arith.constant 0 : i32
    %0 = arith.cmpi eq, %arg1, %c0_i32 : i32
    %1 = arith.extui %0 : i1 to i32
    %c0_i32_0 = arith.constant 0 : i32
    %2 = arith.cmpi ne, %1, %c0_i32_0 : i32
    scf.if %2 {
      %c0_17 = arith.constant 0 : index
      %c0_18 = arith.constant 0 : index
      %c0_19 = arith.constant 0 : index
      %32 = vector.load %arg2[%c0_17, %c0_18, %c0_19] : memref<1x64x128xbf16, #tpu.memory_space<vmem>>, vector<1x64x128xbf16>
      %33 = vector.shape_cast %32 : vector<1x64x128xbf16> to vector<64x128xbf16>
      %c0_20 = arith.constant 0 : index
      %c0_21 = arith.constant 0 : index
      %34 = vector.load %arg3[%c0_20, %c0_21] : memref<128x256xbf16, #tpu.memory_space<vmem>>, vector<128x256xbf16>
      %cst_22 = arith.constant dense<0.000000e+00> : vector<64x256xf32>
      %35 = tpu.matmul %33, %34, %cst_22 {dimension_numbers = #tpu.dot_dimension_numbers<[1], [0], [0], [1], [0, 0, 1, 1], [], []>} : vector<64x128xbf16>, vector<128x256xbf16>, vector<64x256xf32> -> vector<64x256xf32>
      %c0_23 = arith.constant 0 : index
      %c0_24 = arith.constant 0 : index
      %36 = vector.load %arg4[%c0_23, %c0_24] : memref<1x256xf32, #tpu.memory_space<vmem>>, vector<1x256xf32>
      %37 = vector.broadcast %36 : vector<1x256xf32> to vector<64x256xf32>
      %38 = arith.addf %35, %37 : vector<64x256xf32>
      %39 = vector.extract_strided_slice %38 {offsets = [0, 0], sizes = [64, 128], strides = [1, 1]} : vector<64x256xf32> to vector<64x128xf32>
      %40 = arith.truncf %39 : vector<64x128xf32> to vector<64x128xbf16>
      %c0_25 = arith.constant 0 : index
      %c0_26 = arith.constant 0 : index
      %41 = vector.load %arg8[%c0_25, %c0_26] : memref<64x128xbf16, #tpu.memory_space<vmem>>, vector<64x128xbf16>
      tpu.vector_store %arg8[%c0_25, %c0_26], %40 {strides = array<i32>} : memref<64x128xbf16, #tpu.memory_space<vmem>>, vector<64x128xbf16>,
      %42 = vector.extract_strided_slice %38 {offsets = [0, 128], sizes = [64, 128], strides = [1, 1]} : vector<64x256xf32> to vector<64x128xf32>
      %43 = arith.truncf %42 : vector<64x128xf32> to vector<64x128xbf16>
      %c0_27 = arith.constant 0 : index
      %c0_28 = arith.constant 0 : index
      %44 = vector.load %arg9[%c0_27, %c0_28] : memref<64x128xbf16, #tpu.memory_space<vmem>>, vector<64x128xbf16>
      tpu.vector_store %arg9[%c0_27, %c0_28], %43 {strides = array<i32>} : memref<64x128xbf16, #tpu.memory_space<vmem>>, vector<64x128xbf16>,
    } else {
    }
    %c64_i32 = arith.constant 64 : i32
    %3 = arith.muli %arg1, %c64_i32 : i32
    %4 = tpu.assume_multiple %3, 64 : i32
    %c0 = arith.constant 0 : index
    %5 = arith.index_cast %4 : i32 to index
    %c0_1 = arith.constant 0 : index
    %6 = vector.load %arg2[%c0, %5, %c0_1] : memref<1x64x128xbf16, #tpu.memory_space<vmem>>, vector<1x64x128xbf16>
    %7 = vector.shape_cast %6 : vector<1x64x128xbf16> to vector<64x128xbf16>
    %c0_2 = arith.constant 0 : index
    %c0_3 = arith.constant 0 : index
    %8 = vector.load %arg5[%c0_2, %c0_3] : memref<128x128xbf16, #tpu.memory_space<vmem>>, vector<128x128xbf16>
    %cst = arith.constant dense<0.000000e+00> : vector<64x128xf32>
    %9 = tpu.matmul %7, %8, %cst {dimension_numbers = #tpu.dot_dimension_numbers<[1], [0], [0], [1], [0, 0, 1, 1], [], []>} : vector<64x128xbf16>, vector<128x128xbf16>, vector<64x128xf32> -> vector<64x128xf32>
    %c0_4 = arith.constant 0 : index
    %c0_5 = arith.constant 0 : index
    %10 = vector.load %arg6[%c0_4, %c0_5] : memref<1x128xf32, #tpu.memory_space<vmem>>, vector<1x128xf32>
    %11 = vector.broadcast %10 : vector<1x128xf32> to vector<64x128xf32>
    %12 = arith.addf %9, %11 : vector<64x128xf32>
    %13 = arith.truncf %12 : vector<64x128xf32> to vector<64x128xbf16>
    %c0_6 = arith.constant 0 : index
    %c0_7 = arith.constant 0 : index
    %14 = vector.load %arg9[%c0_6, %c0_7] : memref<64x128xbf16, #tpu.memory_space<vmem>>, vector<64x128xbf16>
    %cst_8 = arith.constant dense<0.000000e+00> : vector<64x64xf32>
    %15 = tpu.matmul %13, %14, %cst_8 {dimension_numbers = #tpu.dot_dimension_numbers<[1], [1], [0], [0], [0, 0, 1, 0], [], []>} : vector<64x128xbf16>, vector<64x128xbf16>, vector<64x64xf32> -> vector<64x64xf32>
    %cst_9 = arith.constant dense<0xFF800000> : vector<64xf32>
    %16 = vector.multi_reduction <maximumf>, %15, %cst_9 [1] : vector<64x64xf32> to vector<64xf32>
    %17 = vector.shape_cast %16 : vector<64xf32> to vector<64x1xf32>
    %18 = vector.broadcast %17 : vector<64x1xf32> to vector<64x64xf32>
    %19 = arith.subf %15, %18 : vector<64x64xf32>
    %20 = math.exp %19 : vector<64x64xf32>
    %cst_10 = arith.constant dense<0.000000e+00> : vector<64xf32>
    %21 = vector.multi_reduction <add>, %20, %cst_10 [1] : vector<64x64xf32> to vector<64xf32>
    %22 = vector.shape_cast %21 : vector<64xf32> to vector<64x1xf32>
    %23 = arith.truncf %20 : vector<64x64xf32> to vector<64x64xbf16>
    %c0_11 = arith.constant 0 : index
    %c0_12 = arith.constant 0 : index
    %24 = vector.load %arg8[%c0_11, %c0_12] : memref<64x128xbf16, #tpu.memory_space<vmem>>, vector<64x128xbf16>
    %cst_13 = arith.constant dense<0.000000e+00> : vector<64x128xf32>
    %25 = tpu.matmul %23, %24, %cst_13 {dimension_numbers = #tpu.dot_dimension_numbers<[1], [0], [0], [1], [0, 0, 1, 1], [], []>} : vector<64x64xbf16>, vector<64x128xbf16>, vector<64x128xf32> -> vector<64x128xf32>
    %26 = tpu.reciprocal %22 : vector<64x1xf32> -> vector<64x1xf32>
    %27 = vector.broadcast %26 : vector<64x1xf32> to vector<64x128xf32>
    %28 = arith.mulf %25, %27 : vector<64x128xf32>
    %c0_14 = arith.constant 0 : index
    %c0_15 = arith.constant 0 : index
    %c0_16 = arith.constant 0 : index
    %29 = vector.load %arg7[%c0_14, %c0_15, %c0_16] : memref<1x64x128xf32, #tpu.memory_space<vmem>>, vector<1x64x128xf32>
    %30 = vector.shape_cast %29 : vector<1x64x128xf32> to vector<64x128xf32>
    %31 = vector.shape_cast %28 : vector<64x128xf32> to vector<1x64x128xf32>
    tpu.vector_store %arg7[%c0_14, %c0_15, %c0_16], %31 {strides = array<i32>} : memref<1x64x128xf32, #tpu.memory_space<vmem>>, vector<1x64x128xf32>,
    return
  }
  func.func @transform_0(%arg0: i32, %arg1: i32) -> (i32, i32, i32) {
    %c0_i32 = arith.constant 0 : i32
    %c0_i32_0 = arith.constant 0 : i32
    %c0_i32_1 = arith.constant 0 : i32
    return %arg0, %c0_i32, %c0_i32_0 : i32, i32, i32
  }
  func.func @transform_1(%arg0: i32, %arg1: i32) -> (i32, i32) {
    %c0_i32 = arith.constant 0 : i32
    %c0_i32_0 = arith.constant 0 : i32
    %c0_i32_1 = arith.constant 0 : i32
    return %c0_i32, %c0_i32_0 : i32, i32
  }
  func.func @transform_2(%arg0: i32, %arg1: i32) -> (i32, i32) {
    %c0_i32 = arith.constant 0 : i32
    %c0_i32_0 = arith.constant 0 : i32
    %c0_i32_1 = arith.constant 0 : i32
    return %c0_i32, %c0_i32_0 : i32, i32
  }
  func.func @transform_3(%arg0: i32, %arg1: i32) -> (i32, i32) {
    %c0_i32 = arith.constant 0 : i32
    %c0_i32_0 = arith.constant 0 : i32
    %c0_i32_1 = arith.constant 0 : i32
    return %c0_i32, %c0_i32_0 : i32, i32
  }
  func.func @transform_4(%arg0: i32, %arg1: i32) -> (i32, i32) {
    %c0_i32 = arith.constant 0 : i32
    %c0_i32_0 = arith.constant 0 : i32
    %c0_i32_1 = arith.constant 0 : i32
    return %c0_i32, %c0_i32_0 : i32, i32
  }
  func.func @transform_5(%arg0: i32, %arg1: i32) -> (i32, i32, i32) {
    %c0_i32 = arith.constant 0 : i32
    %c0_i32_0 = arith.constant 0 : i32
    return %arg0, %arg1, %c0_i32 : i32, i32, i32
  }
}

</mosaic_0001>

<llo_original>
// kernel: bam_forward.1
$region0: #{bam_forward.1}
  #allocation0 [shape = 'u32[]', space=smem, size = 0x4, offset = 0x4, fixed_abs, tag = 'smem constant byte address 0x4 - core index']
  #allocation1 [shape = 'u32[144,128]{1,0:T(1,128)}', space=vmem, size = 0x12000, scoped, tag = 'internal scratch']
  #allocation2 [shape = 'bf16[64,128]{1,0:T(16,128)(2,1)}', space=vmem, size = 0x4000, scoped, tag = 'scratch operand']
  #allocation3 [shape = 'bf16[64,128]{1,0:T(16,128)(2,1)}', space=vmem, size = 0x4000, scoped, tag = 'scratch operand']
  %s0 = inlined_call_operand.vmem [shape: bf16[2,64,128], index: 0, kind: input, shape index: {}]
  %s1 = inlined_call_operand.vmem [shape: bf16[128,256], index: 1, kind: input, shape index: {}]
  %s2 = inlined_call_operand.vmem [shape: f32[1,256], index: 2, kind: input, shape index: {}]
  %s3 = inlined_call_operand.vmem [shape: bf16[128,128], index: 3, kind: input, shape index: {}]
  %s4 = inlined_call_operand.vmem [shape: f32[1,128], index: 4, kind: input, shape index: {}]
  %s5 = inlined_call_operand.vmem [shape: f32[2,64,128], index: 5, kind: output, shape index: {}]
  %s6 = sld [smem:[#allocation0]]
  $region57: #{bam_forward.1} parent=0
    _
  %s8 = ssub.s32 1, %s6
  %s9 = scalar_select 0, %s8, %s6
  loop: start=0, step=1, limit=4
  $region2: #{bam_forward.1} parent=0 // loop_pre_header
    _
  $region3: #{bam_forward.1} parent=0 // loop_header
    %s11 = sphi 0, %s15
    %p12 = scmp.ge.s32.totalorder %s11, 4
    %s18 = sphi 0, %s30
    %s19 = sphi 0, %s26
    %s20 = sphi 0, %s18
    %s21 = sphi 0, %s19
    %s22 = sphi 0, %s20
    %s23 = sphi 0, %s21
    %s33 = sphi 0, %s35
    %s36 = sphi 0, %s33
    %s37 = sphi 0, %s36
    %s53 = sphi 0, %s37
    %s57 = sphi 0, %s57
    %s59 = sphi 0, %s57
    %s60 = sphi 0, %s59
    %s74 = sphi 0, %s60
    %s78 = sphi 0, %s78
    %s80 = sphi 0, %s78
    %s81 = sphi 0, %s80
    %s95 = sphi 0, %s81
    %s99 = sphi 0, %s99
    %s101 = sphi 0, %s99
    %s102 = sphi 0, %s101
    %s116 = sphi 0, %s102
    %s120 = sphi 0, %s120
    %s122 = sphi 0, %s120
    %s123 = sphi 0, %s122
    %s137 = sphi 0, %s123
    %s145 = sphi 0, %s147
    %s148 = sphi 0, %s145
    %s149 = sphi 0, %s148
    %s165 = sphi 0, %s149
  $region4: #{bam_forward.1} parent=0 // loop_header_branch
    %14 = sbr.rel (%p12) target = $region8
  $region5: #{bam_forward.1} parent=0 // loop_body
    %s16 = ssub.s32 %s11, 1
    %s17 = ssub.s32 %s11, 2
    %s24 = sadd.s32 1, %s19
    %p25 = scmp.ge.s32.totalorder %s24, 1
    %s26 = scalar_select %p25, 0, %s24
    %s27 = sadd.s32 1, %s18
    %s28 = scalar_select %p25, %s27, %s18
    %p29 = scmp.ge.s32.totalorder %s28, 2
    %s30 = scalar_select %p29, 0, %s28
    %s31 = ssub.s32 %s18, %s30
    %p32 = scmp.eq.s32.totalorder %s31, 0
    %s34 = sadd.s32 %s33, 1
    %s35 = scalar_select %p32, %s33, %s34
    %p38 = pneg %p32
    %p39 = scmp.eq.s32.totalorder %s11, 1
    %p40 = por %p38, %p39
    %p41 = scmp.ne.s32.totalorder %s33, %s36
    %p42 = scmp.eq.s32.totalorder %s11, 0
    %p43 = por %p41, %p42
    %p44 = scmp.ne.s32.totalorder %s33, %s36
    %p45 = scmp.eq.s32.totalorder %s16, 1
    %p46 = por %p44, %p45
    %p47 = scmp.ne.s32.totalorder %s36, %s37
    %p48 = scmp.eq.s32.totalorder %s16, 0
    %p49 = por %p47, %p48
    %p50 = scmp.ne.s32.totalorder %s36, %s37
    %p51 = scmp.eq.s32.totalorder %s17, 1
    %p52 = por %p50, %p51
    %p54 = scmp.ne.s32.totalorder %s37, %s53
    %p55 = scmp.eq.s32.totalorder %s17, 0
    %p56 = por %p54, %p55
    %s58 = sadd.s32 %s57, 1
    %p61 = scmp.eq.s32.totalorder %s11, 1
    %p62 = scmp.ne.s32.totalorder %s57, %s59
    %p63 = scmp.eq.s32.totalorder %s11, 0
    %p64 = por %p62, %p63
    %p65 = scmp.ne.s32.totalorder %s57, %s59
    %p66 = scmp.eq.s32.totalorder %s16, 1
    %p67 = por %p65, %p66
    %p68 = scmp.ne.s32.totalorder %s59, %s60
    %p69 = scmp.eq.s32.totalorder %s16, 0
    %p70 = por %p68, %p69
    %p71 = scmp.ne.s32.totalorder %s59, %s60
    %p72 = scmp.eq.s32.totalorder %s17, 1
    %p73 = por %p71, %p72
    %p75 = scmp.ne.s32.totalorder %s60, %s74
    %p76 = scmp.eq.s32.totalorder %s17, 0
    %p77 = por %p75, %p76
    %s79 = sadd.s32 %s78, 1
    %p82 = scmp.eq.s32.totalorder %s11, 1
    %p83 = scmp.ne.s32.totalorder %s78, %s80
    %p84 = scmp.eq.s32.totalorder %s11, 0
    %p85 = por %p83, %p84
    %p86 = scmp.ne.s32.totalorder %s78, %s80
    %p87 = scmp.eq.s32.totalorder %s16, 1
    %p88 = por %p86, %p87
    %p89 = scmp.ne.s32.totalorder %s80, %s81
    %p90 = scmp.eq.s32.totalorder %s16, 0
    %p91 = por %p89, %p90
    %p92 = scmp.ne.s32.totalorder %s80, %s81
    %p93 = scmp.eq.s32.totalorder %s17, 1
    %p94 = por %p92, %p93
    %p96 = scmp.ne.s32.totalorder %s81, %s95
    %p97 = scmp.eq.s32.totalorder %s17, 0
    %p98 = por %p96, %p97
    %s100 = sadd.s32 %s99, 1
    %p103 = scmp.eq.s32.totalorder %s11, 1
    %p104 = scmp.ne.s32.totalorder %s99, %s101
    %p105 = scmp.eq.s32.totalorder %s11, 0
    %p106 = por %p104, %p105
    %p107 = scmp.ne.s32.totalorder %s99, %s101
    %p108 = scmp.eq.s32.totalorder %s16, 1
    %p109 = por %p107, %p108
    %p110 = scmp.ne.s32.totalorder %s101, %s102
    %p111 = scmp.eq.s32.totalorder %s16, 0
    %p112 = por %p110, %p111
    %p113 = scmp.ne.s32.totalorder %s101, %s102
    %p114 = scmp.eq.s32.totalorder %s17, 1
    %p115 = por %p113, %p114
    %p117 = scmp.ne.s32.totalorder %s102, %s116
    %p118 = scmp.eq.s32.totalorder %s17, 0
    %p119 = por %p117, %p118
    %s121 = sadd.s32 %s120, 1
    %p124 = scmp.eq.s32.totalorder %s11, 1
    %p125 = scmp.ne.s32.totalorder %s120, %s122
    %p126 = scmp.eq.s32.totalorder %s11, 0
    %p127 = por %p125, %p126
    %p128 = scmp.ne.s32.totalorder %s120, %s122
    %p129 = scmp.eq.s32.totalorder %s16, 1
    %p130 = por %p128, %p129
    %p131 = scmp.ne.s32.totalorder %s122, %s123
    %p132 = scmp.eq.s32.totalorder %s16, 0
    %p133 = por %p131, %p132
    %p134 = scmp.ne.s32.totalorder %s122, %s123
    %p135 = scmp.eq.s32.totalorder %s17, 1
    %p136 = por %p134, %p135
    %p138 = scmp.ne.s32.totalorder %s123, %s137
    %p139 = scmp.eq.s32.totalorder %s17, 0
    %p140 = por %p138, %p139
    %s141 = ssub.s32 %s18, %s30
    %s142 = ssub.s32 %s19, %s26
    %s143 = sor.u32 %s141, %s142
    %p144 = scmp.eq.s32.totalorder %s143, 0
    %s146 = sadd.s32 %s145, 1
    %s147 = scalar_select %p144, %s145, %s146
    %p150 = pneg %p144
    %p151 = scmp.eq.s32.totalorder %s11, 1
    %p152 = por %p150, %p151
    %p153 = scmp.ne.s32.totalorder %s145, %s148
    %p154 = scmp.eq.s32.totalorder %s11, 0
    %p155 = por %p153, %p154
    %p156 = scmp.ne.s32.totalorder %s145, %s148
    %p157 = scmp.eq.s32.totalorder %s16, 1
    %p158 = por %p156, %p157
    %p159 = scmp.ne.s32.totalorder %s148, %s149
    %p160 = scmp.eq.s32.totalorder %s16, 0
    %p161 = por %p159, %p160
    %p162 = scmp.ne.s32.totalorder %s148, %s149
    %p163 = scmp.eq.s32.totalorder %s17, 1
    %p164 = por %p162, %p163
    %p166 = scmp.ne.s32.totalorder %s149, %s165
    %p167 = scmp.eq.s32.totalorder %s17, 0
    %p168 = por %p166, %p167
    %p169 = scmp.le.s32.totalorder 1, %s11
    %p170 = scmp.lt.s32.totalorder %s11, 3
    %p171 = pnand %p169, %p170
    %p172 = pneg %p171
    // Predicated region
    $region9: #{bam_forward.1} parent=5 // pred_check
      _
    $region10: #{bam_forward.1} parent=5 // pred_check_branch
      %174 = sbr.rel (%p171) target = $region12
    $region11: #{bam_forward.1} parent=5 // pred_region
      %s175 = ssub.s32 %s11, 1
      // Predicated region
      $region13: #{bam_forward.1} parent=11 // pred_check
        %p176 = pneg %p70
      $region14: #{bam_forward.1} parent=11 // pred_check_branch
        %178 = sbr.rel (%p176) target = $region16
      $region15: #{bam_forward.1} parent=11 // pred_region
        _
      $region16: #{bam_forward.1} parent=11 // pred_fallthru
        _
      // Predicated region
      $region17: #{bam_forward.1} parent=11 // pred_check
        %p179 = pneg %p91
      $region18: #{bam_forward.1} parent=11 // pred_check_branch
        %181 = sbr.rel (%p179) target = $region20
      $region19: #{bam_forward.1} parent=11 // pred_region
        _
      $region20: #{bam_forward.1} parent=11 // pred_fallthru
        _
      // Predicated region
      $region21: #{bam_forward.1} parent=11 // pred_check
        %p182 = pneg %p112
      $region22: #{bam_forward.1} parent=11 // pred_check_branch
        %184 = sbr.rel (%p182) target = $region24
      $region23: #{bam_forward.1} parent=11 // pred_region
        _
      $region24: #{bam_forward.1} parent=11 // pred_fallthru
        _
      // Predicated region
      $region25: #{bam_forward.1} parent=11 // pred_check
        %p185 = pneg %p133
      $region26: #{bam_forward.1} parent=11 // pred_check_branch
        %187 = sbr.rel (%p185) target = $region28
      $region27: #{bam_forward.1} parent=11 // pred_region
        _
      $region28: #{bam_forward.1} parent=11 // pred_fallthru
        _
    $region12: #{bam_forward.1} parent=5 // pred_fallthru
      _
    %p188 = scmp.lt.s32.totalorder %s11, 2
    // Predicated region
    $region29: #{bam_forward.1} parent=5 // pred_check
      %p189 = pneg %p188
    $region30: #{bam_forward.1} parent=5 // pred_check_branch
      %191 = sbr.rel (%p189) target = $region32
    $region31: #{bam_forward.1} parent=5 // pred_region
      // Predicated region
      $region33: #{bam_forward.1} parent=31 // pred_check
        %p192 = pneg %p43
      $region34: #{bam_forward.1} parent=31 // pred_check_branch
        %194 = sbr.rel (%p192) target = $region36
      $region35: #{bam_forward.1} parent=31 // pred_region
        %p195 = scmp.lt.s32.totalorder %s18, 1
        %s196 = scalar_select %p195, %s18, 1
        %s197 = smul.addr %s196, 8
        %s198 = smul.addr %s197, 4
        %s199 = scalar_lea.vmem %s0, %s198
      $region36: #{bam_forward.1} parent=31 // pred_fallthru
        _
    $region32: #{bam_forward.1} parent=5 // pred_fallthru
      _
    %p200 = scmp.le.s32.totalorder 1, %s11
    %p201 = scmp.lt.s32.totalorder %s11, 3
    %p202 = pnand %p200, %p201
    %p203 = pneg %p202
    // Predicated region
    $region37: #{bam_forward.1} parent=5 // pred_check
      _
    $region38: #{bam_forward.1} parent=5 // pred_check_branch
      %205 = sbr.rel (%p202) target = $region40
    $region39: #{bam_forward.1} parent=5 // pred_region
      %s206 = ssub.s32 %s11, 1
      %p207 = scmp.lt.s32.totalorder %s20, 1
      %s208 = scalar_select %p207, %s20, 1
      %s209 = smul.addr %s208, 8
      %s210 = smul.addr %s209, 4
      %s211 = scalar_lea.vmem %s0, %s210
      %p212 = pneg %p49
      %p213 = pneg %p46
      %p214 = pneg %p70
      %p215 = pneg %p67
      %p216 = pneg %p91
      %p217 = pneg %p88
      %p218 = pneg %p112
      %p219 = pneg %p109
      %p220 = pneg %p133
      %p221 = pneg %p130
      %p222 = pneg %p161
      %p223 = pneg %p158
      %s224 = smul.u32 8, %s21
      %p225 = scmp.lt.s32.totalorder %s20, 1
      %s226 = scalar_select %p225, %s20, 1
      %p227 = scmp.lt.s32.totalorder %s224, 7
      %s228 = scalar_select %p227, %s224, 7
      %s229 = smul.addr %s226, 8
      %s230 = sadd.s32 %s228, %s229
      %s231 = smul.addr %s230, 8
      %s232 = scalar_lea.vmem %s5, %s231
      %p233 = scmp.lt.s32.totalorder %s20, 1
      %s234 = scalar_select %p233, %s20, 1
      %s235 = smul.addr %s234, 8
      %s236 = smul.addr %s235, 4
      %s237 = scalar_lea.vmem %s0, %s236
      %s238 = smul.u32 8, %s21
      %p239 = scmp.lt.s32.totalorder %s20, 1
      %s240 = scalar_select %p239, %s20, 1
      %p241 = scmp.lt.s32.totalorder %s238, 7
      %s242 = scalar_select %p241, %s238, 7
      %s243 = smul.addr %s240, 8
      %s244 = sadd.s32 %s242, %s243
      %s245 = smul.addr %s244, 8
      %s246 = scalar_lea.vmem %s5, %s245
      %s247 = smul.u32 8, %s21
      %p249 = scmp.eq.s32.totalorder %s21, 0
      // Predicated region
      $region41: #{bam_forward.1} parent=39 // pred_check
        %p250 = pneg %p249
      $region42: #{bam_forward.1} parent=39 // pred_check_branch
        %252 = sbr.rel (%p250) target = $region44
      $region43: #{bam_forward.1} parent=39 // pred_region
        %v253 = vld [vmem:[%s237] sm:$0xf]
        %v254 = vld [vmem:[%s237 + $0x4] sm:$0xf]
        %v255 = vld [vmem:[%s237 + $0x8] sm:$0xf]
        %v256 = vld [vmem:[%s237 + $0xc] sm:$0xf]
        %v257 = vld [vmem:[%s237 + $0x10] sm:$0xf]
        %v258 = vld [vmem:[%s237 + $0x14] sm:$0xf]
        %v259 = vld [vmem:[%s237 + $0x18] sm:$0xf]
        %v260 = vld [vmem:[%s237 + $0x1c] sm:$0xf]
        %v261 = vld [vmem:[%s1] sm:$0xff]
        %v262 = vld [vmem:[%s1 + $0x8] sm:$0xff]
        %v263 = vld [vmem:[%s1 + $0x10] sm:$0xff]
        %v264 = vld [vmem:[%s1 + $0x18] sm:$0xff]
        %v265 = vld [vmem:[%s1 + $0x20] sm:$0xff]
        %v266 = vld [vmem:[%s1 + $0x28] sm:$0xff]
        %v267 = vld [vmem:[%s1 + $0x30] sm:$0xff]
        %v268 = vld [vmem:[%s1 + $0x38] sm:$0xff]
        %v269 = vld [vmem:[%s1 + $0x40] sm:$0xff]
        %v270 = vld [vmem:[%s1 + $0x48] sm:$0xff]
        %v271 = vld [vmem:[%s1 + $0x50] sm:$0xff]
        %v272 = vld [vmem:[%s1 + $0x58] sm:$0xff]
        %v273 = vld [vmem:[%s1 + $0x60] sm:$0xff]
        %v274 = vld [vmem:[%s1 + $0x68] sm:$0xff]
        %v275 = vld [vmem:[%s1 + $0x70] sm:$0xff]
        %v276 = vld [vmem:[%s1 + $0x78] sm:$0xff]
        %v277 = vld [vmem:[%s2] sm:$0x3]
        %v279 = vlaneseq
        %v280 = vshrl.u32 %v279, 7
        %v281 = vsub.s32 0, %v280
        %v282 = vrot.slane %v277, %v281
        %v283 = vlaneseq
        %v284 = vshrl.u32 %v283, 7
        %v285 = vsub.s32 1, %v284
        %v286 = vrot.slane %v277, %v285
        %v297 = vunpack.c.l.b16 %v253
        %v298 = vunpack.c.l.b16 %v254
        %v299 = vunpack.c.l.b16 %v255
        %v300 = vunpack.c.l.b16 %v256
        %v301 = vunpack.c.l.b16 %v257
        %v302 = vunpack.c.l.b16 %v258
        %v303 = vunpack.c.l.b16 %v259
        %v304 = vunpack.c.l.b16 %v260
        %v305 = vpack.c.b16 %v298, %v297
        %v306 = vpack.c.b16 %v300, %v299
        %v307 = vpack.c.b16 %v302, %v301
        %v308 = vpack.c.b16 %v304, %v303
        %v329 = vunpack.c.l.b16 %v261
        %v330 = vunpack.c.h.b16 %v261
        %v331 = vunpack.c.l.b16 %v262
        %v332 = vunpack.c.h.b16 %v262
        %v333 = vunpack.c.l.b16 %v263
        %v334 = vunpack.c.h.b16 %v263
        %v335 = vunpack.c.l.b16 %v264
        %v336 = vunpack.c.h.b16 %v264
        %v337 = vunpack.c.l.b16 %v265
        %v338 = vunpack.c.h.b16 %v265
        %v339 = vunpack.c.l.b16 %v266
        %v340 = vunpack.c.h.b16 %v266
        %v341 = vunpack.c.l.b16 %v267
        %v342 = vunpack.c.h.b16 %v267
        %v343 = vunpack.c.l.b16 %v268
        %v344 = vunpack.c.h.b16 %v268
        %v345 = vunpack.c.l.b16 %v269
        %v346 = vunpack.c.h.b16 %v269
        %v347 = vunpack.c.l.b16 %v270
        %v348 = vunpack.c.h.b16 %v270
        %v349 = vunpack.c.l.b16 %v271
        %v350 = vunpack.c.h.b16 %v271
        %v351 = vunpack.c.l.b16 %v272
        %v352 = vunpack.c.h.b16 %v272
        %v353 = vunpack.c.l.b16 %v273
        %v354 = vunpack.c.h.b16 %v273
        %v355 = vunpack.c.l.b16 %v274
        %v356 = vunpack.c.h.b16 %v274
        %v357 = vunpack.c.l.b16 %v275
        %v358 = vunpack.c.h.b16 %v275
        %v359 = vunpack.c.l.b16 %v276
        %v360 = vunpack.c.h.b16 %v276
        %v361 = vpack.c.b16 %v331, %v329
        %v362 = vpack.c.b16 %v332, %v330
        %v363 = vpack.c.b16 %v335, %v333
        %v364 = vpack.c.b16 %v336, %v334
        %v365 = vpack.c.b16 %v339, %v337
        %v366 = vpack.c.b16 %v340, %v338
        %v367 = vpack.c.b16 %v343, %v341
        %v368 = vpack.c.b16 %v344, %v342
        %v369 = vpack.c.b16 %v347, %v345
        %v370 = vpack.c.b16 %v348, %v346
        %v371 = vpack.c.b16 %v351, %v349
        %v372 = vpack.c.b16 %v352, %v350
        %v373 = vpack.c.b16 %v355, %v353
        %v374 = vpack.c.b16 %v356, %v354
        %v375 = vpack.c.b16 %v359, %v357
        %v376 = vpack.c.b16 %v360, %v358
        %393 = vmatprep.subr.bf16.mxu0 %v362
        %394 = vmatpush1.bf16.msra.mxu0 %v361
        %395 = vmatprep.subr.bf16.mxu0 %v364
        %396 = vmatpush1.bf16.msra.mxu0 %v363
        %397 = vmatprep.subr.bf16.mxu0 %v366
        %398 = vmatpush1.bf16.msra.mxu0 %v365
        %399 = vmatprep.subr.bf16.mxu0 %v368
        %400 = vmatpush1.bf16.msra.mxu0 %v367
        %401 = vmatprep.subr.bf16.mxu0 %v370
        %402 = vmatpush1.bf16.msra.mxu0 %v369
        %403 = vmatprep.subr.bf16.mxu0 %v372
        %404 = vmatpush1.bf16.msra.mxu0 %v371
        %405 = vmatprep.subr.bf16.mxu0 %v374
        %406 = vmatpush1.bf16.msra.mxu0 %v373
        %407 = vmatprep.subr.bf16.mxu0 %v376
        %408 = vmatpush1.bf16.msra.mxu0 %v375
        %409 = vmatprep.subr.bf16.mxu0 0
        %410 = vmatpush1.bf16.msra.mxu0 0
        %411 = vmatprep.subr.bf16.mxu0 0
        %412 = vmatpush1.bf16.msra.mxu0 0
        %413 = vmatprep.subr.bf16.mxu0 0
        %414 = vmatpush1.bf16.msra.mxu0 0
        %415 = vmatprep.subr.bf16.mxu0 0
        %416 = vmatpush1.bf16.msra.mxu0 0
        %417 = vmatprep.subr.bf16.mxu0 0
        %418 = vmatpush1.bf16.msra.mxu0 0
        %419 = vmatprep.subr.bf16.mxu0 0
        %420 = vmatpush1.bf16.msra.mxu0 0
        %421 = vmatprep.subr.bf16.mxu0 0
        %422 = vmatpush1.bf16.msra.mxu0 0
        %423 = vmatprep.subr.bf16.mxu0 0
        %424 = vmatpush1.bf16.msra.mxu0 0
        %425 = vmatprep.mubr.bf16.mxu0 0
        %426 = vmatmul.mubr.bf16.gmra.mrb[0].mxu0 %v305
        %v427 = vpop.f32.mrb[0].mxu0
        %v428 = vadd.f32 %v282, %v427
        %v429 = vpop.f32.mrb[0].mxu0
        %v430 = vadd.f32 %v286, %v429
        %v431 = vpop.f32.mrb[0].mxu0
        %v432 = vadd.f32 %v282, %v431
        %v433 = vpop.f32.mrb[0].mxu0
        %v434 = vadd.f32 %v286, %v433
        %435 = vmatprep.mubr.bf16.mxu0 0
        %436 = vmatmul.mubr.bf16.gmra.mrb[0].mxu0 %v306
        %v437 = vpop.f32.mrb[0].mxu0
        %v438 = vadd.f32 %v282, %v437
        %v439 = vpop.f32.mrb[0].mxu0
        %v440 = vadd.f32 %v286, %v439
        %v441 = vpop.f32.mrb[0].mxu0
        %v442 = vadd.f32 %v282, %v441
        %v443 = vpop.f32.mrb[0].mxu0
        %v444 = vadd.f32 %v286, %v443
        %445 = vmatprep.mubr.bf16.mxu0 0
        %446 = vmatmul.mubr.bf16.gmra.mrb[0].mxu0 %v307
        %v447 = vpop.f32.mrb[0].mxu0
        %v448 = vadd.f32 %v282, %v447
        %v449 = vpop.f32.mrb[0].mxu0
        %v450 = vadd.f32 %v286, %v449
        %v451 = vpop.f32.mrb[0].mxu0
        %v452 = vadd.f32 %v282, %v451
        %v453 = vpop.f32.mrb[0].mxu0
        %v454 = vadd.f32 %v286, %v453
        %455 = vmatprep.mubr.bf16.mxu0 0
        %456 = vmatmul.mubr.bf16.gmra.mrb[0].mxu0 %v308
        %v457 = vpop.f32.mrb[0].mxu0
        %v458 = vadd.f32 %v282, %v457
        %v459 = vpop.f32.mrb[0].mxu0
        %v460 = vadd.f32 %v286, %v459
        %v461 = vpop.f32.mrb[0].mxu0
        %v462 = vadd.f32 %v282, %v461
        %v463 = vpop.f32.mrb[0].mxu0
        %v464 = vadd.f32 %v286, %v463
        %465 = vdwg.mxu0
        %v466 = vpack.c.bf16 %v432, %v428
        %v467 = vpack.c.bf16 %v442, %v438
        %v468 = vpack.c.bf16 %v452, %v448
        %v469 = vpack.c.bf16 %v462, %v458
        %470 = vst [vmem:[#allocation2] sm:$0xff] %v466
        %471 = vst [vmem:[#allocation2 + $0x8] sm:$0xff] %v467
        %472 = vst [vmem:[#allocation2 + $0x10] sm:$0xff] %v468
        %473 = vst [vmem:[#allocation2 + $0x18] sm:$0xff] %v469
        %v474 = vpack.c.bf16 %v434, %v430
        %v475 = vpack.c.bf16 %v444, %v440
        %v476 = vpack.c.bf16 %v454, %v450
        %v477 = vpack.c.bf16 %v464, %v460
        %478 = vst [vmem:[#allocation3] sm:$0xff] %v474
        %479 = vst [vmem:[#allocation3 + $0x8] sm:$0xff] %v475
        %480 = vst [vmem:[#allocation3 + $0x10] sm:$0xff] %v476
        %481 = vst [vmem:[#allocation3 + $0x18] sm:$0xff] %v477
      $region44: #{bam_forward.1} parent=39 // pred_fallthru
        _
      %s482 = smul.u32 %s21, 64
      %s483 = sshra.s32 %s482, 3
      %s484 = sand.u32 %s482, 7
      %s485 = smul.addr %s483, 4
      %s486 = scalar_lea.vmem %s237, %s485
      %v487 = vld [vmem:[%s486] sm:$0xf]
      %v488 = vld [vmem:[%s486 + $0x4] sm:$0xf]
      %v489 = vld [vmem:[%s486 + $0x8] sm:$0xf]
      %v490 = vld [vmem:[%s486 + $0xc] sm:$0xf]
      %v491 = vld [vmem:[%s486 + $0x10] sm:$0xf]
      %v492 = vld [vmem:[%s486 + $0x14] sm:$0xf]
      %v493 = vld [vmem:[%s486 + $0x18] sm:$0xf]
      %v494 = vld [vmem:[%s486 + $0x1c] sm:$0xf]
      %v495 = vld [vmem:[%s3] sm:$0xf]
      %v496 = vld [vmem:[%s3 + $0x4] sm:$0xf]
      %v497 = vld [vmem:[%s3 + $0x8] sm:$0xf]
      %v498 = vld [vmem:[%s3 + $0xc] sm:$0xf]
      %v499 = vld [vmem:[%s3 + $0x10] sm:$0xf]
      %v500 = vld [vmem:[%s3 + $0x14] sm:$0xf]
      %v501 = vld [vmem:[%s3 + $0x18] sm:$0xf]
      %v502 = vld [vmem:[%s3 + $0x1c] sm:$0xf]
      %v503 = vld [vmem:[%s3 + $0x20] sm:$0xf]
      %v504 = vld [vmem:[%s3 + $0x24] sm:$0xf]
      %v505 = vld [vmem:[%s3 + $0x28] sm:$0xf]
      %v506 = vld [vmem:[%s3 + $0x2c] sm:$0xf]
      %v507 = vld [vmem:[%s3 + $0x30] sm:$0xf]
      %v508 = vld [vmem:[%s3 + $0x34] sm:$0xf]
      %v509 = vld [vmem:[%s3 + $0x38] sm:$0xf]
      %v510 = vld [vmem:[%s3 + $0x3c] sm:$0xf]
      %v511 = vld [vmem:[%s4] sm:$0x1]
      %v513 = vlaneseq
      %v514 = vshrl.u32 %v513, 7
      %v515 = vsub.s32 0, %v514
      %v516 = vrot.slane %v511, %v515
      %v526 = vunpack.c.l.b16 %v487
      %v527 = vunpack.c.l.b16 %v488
      %v528 = vunpack.c.l.b16 %v489
      %v529 = vunpack.c.l.b16 %v490
      %v530 = vunpack.c.l.b16 %v491
      %v531 = vunpack.c.l.b16 %v492
      %v532 = vunpack.c.l.b16 %v493
      %v533 = vunpack.c.l.b16 %v494
      %v534 = vpack.c.b16 %v527, %v526
      %v535 = vpack.c.b16 %v529, %v528
      %v536 = vpack.c.b16 %v531, %v530
      %v537 = vpack.c.b16 %v533, %v532
      %v558 = vunpack.c.l.b16 %v495
      %v559 = vunpack.c.l.b16 %v496
      %v560 = vunpack.c.l.b16 %v497
      %v561 = vunpack.c.l.b16 %v498
      %v562 = vunpack.c.l.b16 %v499
      %v563 = vunpack.c.l.b16 %v500
      %v564 = vunpack.c.l.b16 %v501
      %v565 = vunpack.c.l.b16 %v502
      %v566 = vunpack.c.l.b16 %v503
      %v567 = vunpack.c.l.b16 %v504
      %v568 = vunpack.c.l.b16 %v505
      %v569 = vunpack.c.l.b16 %v506
      %v570 = vunpack.c.l.b16 %v507
      %v571 = vunpack.c.l.b16 %v508
      %v572 = vunpack.c.l.b16 %v509
      %v573 = vunpack.c.l.b16 %v510
      %v574 = vpack.c.b16 %v559, %v558
      %v575 = vpack.c.b16 %v561, %v560
      %v576 = vpack.c.b16 %v563, %v562
      %v577 = vpack.c.b16 %v565, %v564
      %v578 = vpack.c.b16 %v567, %v566
      %v579 = vpack.c.b16 %v569, %v568
      %v580 = vpack.c.b16 %v571, %v570
      %v581 = vpack.c.b16 %v573, %v572
      %590 = vmatprep.subr.bf16.mxu0 0
      %591 = vmatpush1.bf16.msra.mxu0 %v574
      %592 = vmatprep.subr.bf16.mxu0 0
      %593 = vmatpush1.bf16.msra.mxu0 %v575
      %594 = vmatprep.subr.bf16.mxu0 0
      %595 = vmatpush1.bf16.msra.mxu0 %v576
      %596 = vmatprep.subr.bf16.mxu0 0
      %597 = vmatpush1.bf16.msra.mxu0 %v577
      %598 = vmatprep.subr.bf16.mxu0 0
      %599 = vmatpush1.bf16.msra.mxu0 %v578
      %600 = vmatprep.subr.bf16.mxu0 0
      %601 = vmatpush1.bf16.msra.mxu0 %v579
      %602 = vmatprep.subr.bf16.mxu0 0
      %603 = vmatpush1.bf16.msra.mxu0 %v580
      %604 = vmatprep.subr.bf16.mxu0 0
      %605 = vmatpush1.bf16.msra.mxu0 %v581
      %606 = vmatprep.subr.bf16.mxu0 0
      %607 = vmatpush1.bf16.msra.mxu0 0
      %608 = vmatprep.subr.bf16.mxu0 0
      %609 = vmatpush1.bf16.msra.mxu0 0
      %610 = vmatprep.subr.bf16.mxu0 0
      %611 = vmatpush1.bf16.msra.mxu0 0
      %612 = vmatprep.subr.bf16.mxu0 0
      %613 = vmatpush1.bf16.msra.mxu0 0
      %614 = vmatprep.subr.bf16.mxu0 0
      %615 = vmatpush1.bf16.msra.mxu0 0
      %616 = vmatprep.subr.bf16.mxu0 0
      %617 = vmatpush1.bf16.msra.mxu0 0
      %618 = vmatprep.subr.bf16.mxu0 0
      %619 = vmatpush1.bf16.msra.mxu0 0
      %620 = vmatprep.subr.bf16.mxu0 0
      %621 = vmatpush1.bf16.msra.mxu0 0
      %622 = vmatprep.mubr.bf16.mxu0 0
      %623 = vmatmul.mubr.bf16.gmra.mrb[0].mxu0 %v534
      %v624 = vpop.f32.mrb[0].mxu0
      %v625 = vadd.f32 %v516, %v624
      %v626 = vpop.f32.mrb[0].mxu0
      %v627 = vpop.f32.mrb[0].mxu0
      %v628 = vadd.f32 %v516, %v627
      %v629 = vpop.f32.mrb[0].mxu0
      %630 = vmatprep.mubr.bf16.mxu0 0
      %631 = vmatmul.mubr.bf16.gmra.mrb[0].mxu0 %v535
      %v632 = vpop.f32.mrb[0].mxu0
      %v633 = vadd.f32 %v516, %v632
      %v634 = vpop.f32.mrb[0].mxu0
      %v635 = vpop.f32.mrb[0].mxu0
      %v636 = vadd.f32 %v516, %v635
      %v637 = vpop.f32.mrb[0].mxu0
      %638 = vmatprep.mubr.bf16.mxu0 0
      %639 = vmatmul.mubr.bf16.gmra.mrb[0].mxu0 %v536
      %v640 = vpop.f32.mrb[0].mxu0
      %v641 = vadd.f32 %v516, %v640
      %v642 = vpop.f32.mrb[0].mxu0
      %v643 = vpop.f32.mrb[0].mxu0
      %v644 = vadd.f32 %v516, %v643
      %v645 = vpop.f32.mrb[0].mxu0
      %646 = vmatprep.mubr.bf16.mxu0 0
      %647 = vmatmul.mubr.bf16.gmra.mrb[0].mxu0 %v537
      %v648 = vpop.f32.mrb[0].mxu0
      %v649 = vadd.f32 %v516, %v648
      %v650 = vpop.f32.mrb[0].mxu0
      %v651 = vpop.f32.mrb[0].mxu0
      %v652 = vadd.f32 %v516, %v651
      %v653 = vpop.f32.mrb[0].mxu0
      %654 = vdwg.mxu0
      %v655 = vpack.c.bf16 %v628, %v625
      %v656 = vpack.c.bf16 %v636, %v633
      %v657 = vpack.c.bf16 %v644, %v641
      %v658 = vpack.c.bf16 %v652, %v649
      %v659 = vld [vmem:[#allocation3] sm:$0xff]
      %v660 = vld [vmem:[#allocation3 + $0x8] sm:$0xff]
      %v661 = vld [vmem:[#allocation3 + $0x10] sm:$0xff]
      %v662 = vld [vmem:[#allocation3 + $0x18] sm:$0xff]
      %663 = vmatprep.subr.bf16.mxu0 0
      %664 = vmatpush1.bf16.xpose.msra.mxu0 %v659
      %665 = vmatprep.subr.bf16.mxu0 0
      %666 = vmatpush1.bf16.xpose.msra.mxu0 %v660
      %667 = vmatprep.subr.bf16.mxu0 0
      %668 = vmatpush1.bf16.xpose.msra.mxu0 %v661
      %669 = vmatprep.subr.bf16.mxu0 0
      %670 = vmatpush1.bf16.xpose.msra.mxu0 %v662
      %671 = vmatprep.subr.bf16.mxu0 0
      %672 = vmatpush1.bf16.xpose.msra.mxu0 0
      %673 = vmatprep.subr.bf16.mxu0 0
      %674 = vmatpush1.bf16.xpose.msra.mxu0 0
      %675 = vmatprep.subr.bf16.mxu0 0
      %676 = vmatpush1.bf16.xpose.msra.mxu0 0
      %677 = vmatprep.subr.bf16.mxu0 0
      %678 = vmatpush1.bf16.xpose.msra.mxu0 0
      %679 = vmatprep.subr.bf16.mxu0 0
      %680 = vmatpush1.bf16.xpose.msra.mxu0 0
      %681 = vmatprep.subr.bf16.mxu0 0
      %682 = vmatpush1.bf16.xpose.msra.mxu0 0
      %683 = vmatprep.subr.bf16.mxu0 0
      %684 = vmatpush1.bf16.xpose.msra.mxu0 0
      %685 = vmatprep.subr.bf16.mxu0 0
      %686 = vmatpush1.bf16.xpose.msra.mxu0 0
      %687 = vmatprep.subr.bf16.mxu0 0
      %688 = vmatpush1.bf16.xpose.msra.mxu0 0
      %689 = vmatprep.subr.bf16.mxu0 0
      %690 = vmatpush1.bf16.xpose.msra.mxu0 0
      %691 = vmatprep.subr.bf16.mxu0 0
      %692 = vmatpush1.bf16.xpose.msra.mxu0 0
      %693 = vmatprep.subr.bf16.mxu0 0
      %694 = vmatpush1.bf16.xpose.msra.mxu0 0
      %695 = vmatprep.mubr.bf16.mxu0 0
      %696 = vmatmul.mubr.bf16.gmra.mrb[0].mxu0 %v655
      %v697 = vpop.f32.mrb[0].mxu0
      %v698 = vadd.f32 0.0, %v697
      %v699 = vpop.f32.mrb[0].mxu0
      %v700 = vpop.f32.mrb[0].mxu0
      %v701 = vadd.f32 0.0, %v700
      %v702 = vpop.f32.mrb[0].mxu0
      %703 = vmatprep.mubr.bf16.mxu0 0
      %704 = vmatmul.mubr.bf16.gmra.mrb[0].mxu0 %v656
      %v705 = vpop.f32.mrb[0].mxu0
      %v706 = vadd.f32 0.0, %v705
      %v707 = vpop.f32.mrb[0].mxu0
      %v708 = vpop.f32.mrb[0].mxu0
      %v709 = vadd.f32 0.0, %v708
      %v710 = vpop.f32.mrb[0].mxu0
      %711 = vmatprep.mubr.bf16.mxu0 0
      %712 = vmatmul.mubr.bf16.gmra.mrb[0].mxu0 %v657
      %v713 = vpop.f32.mrb[0].mxu0
      %v714 = vadd.f32 0.0, %v713
      %v715 = vpop.f32.mrb[0].mxu0
      %v716 = vpop.f32.mrb[0].mxu0
      %v717 = vadd.f32 0.0, %v716
      %v718 = vpop.f32.mrb[0].mxu0
      %719 = vmatprep.mubr.bf16.mxu0 0
      %720 = vmatmul.mubr.bf16.gmra.mrb[0].mxu0 %v658
      %v721 = vpop.f32.mrb[0].mxu0
      %v722 = vadd.f32 0.0, %v721
      %v723 = vpop.f32.mrb[0].mxu0
      %v724 = vpop.f32.mrb[0].mxu0
      %v725 = vadd.f32 0.0, %v724
      %v726 = vpop.f32.mrb[0].mxu0
      %727 = vdwg.mxu0
      %vm728 = vcmask 523264
      %v729 = vsel %vm728, %v698, -inf
      %730 = vmax.xlane.f32.xlu0 %v729
      %v731 = vpop.xlane.xlu0 %730
      %v732 = vsel %vm728, %v701, -inf
      %733 = vmax.xlane.f32.xlu0 %v732
      %v734 = vpop.xlane.xlu0 %733
      %v735 = vsel %vm728, %v706, -inf
      %736 = vmax.xlane.f32.xlu0 %v735
      %v737 = vpop.xlane.xlu0 %736
      %v738 = vsel %vm728, %v709, -inf
      %739 = vmax.xlane.f32.xlu0 %v738
      %v740 = vpop.xlane.xlu0 %739
      %v741 = vsel %vm728, %v714, -inf
      %742 = vmax.xlane.f32.xlu0 %v741
      %v743 = vpop.xlane.xlu0 %742
      %v744 = vsel %vm728, %v717, -inf
      %745 = vmax.xlane.f32.xlu0 %v744
      %v746 = vpop.xlane.xlu0 %745
      %v747 = vsel %vm728, %v722, -inf
      %748 = vmax.xlane.f32.xlu0 %v747
      %v749 = vpop.xlane.xlu0 %748
      %v750 = vsel %vm728, %v725, -inf
      %751 = vmax.xlane.f32.xlu0 %v750
      %v752 = vpop.xlane.xlu0 %751
      %v753 = vsub.f32 %v698, %v731
      %v754 = vsub.f32 %v701, %v734
      %v755 = vsub.f32 %v706, %v737
      %v756 = vsub.f32 %v709, %v740
      %v757 = vsub.f32 %v714, %v743
      %v758 = vsub.f32 %v717, %v746
      %v759 = vsub.f32 %v722, %v749
      %v760 = vsub.f32 %v725, %v752
      %v761 = vmul.f32 %v753, 1.442695
      %v762 = vpow.pop %v761
      %v763 = vmul.f32 %v754, 1.442695
      %v764 = vpow.pop %v763
      %v765 = vmul.f32 %v755, 1.442695
      %v766 = vpow.pop %v765
      %v767 = vmul.f32 %v756, 1.442695
      %v768 = vpow.pop %v767
      %v769 = vmul.f32 %v757, 1.442695
      %v770 = vpow.pop %v769
      %v771 = vmul.f32 %v758, 1.442695
      %v772 = vpow.pop %v771
      %v773 = vmul.f32 %v759, 1.442695
      %v774 = vpow.pop %v773
      %v775 = vmul.f32 %v760, 1.442695
      %v776 = vpow.pop %v775
      %v777 = vsel %vm728, %v762, 0.0
      %778 = vadd.xlane.f32.xlu0 %v777
      %v779 = vpop.xlane.xlu0 %778
      %v780 = vsel %vm728, %v764, 0.0
      %781 = vadd.xlane.f32.xlu0 %v780
      %v782 = vpop.xlane.xlu0 %781
      %v783 = vsel %vm728, %v766, 0.0
      %784 = vadd.xlane.f32.xlu0 %v783
      %v785 = vpop.xlane.xlu0 %784
      %v786 = vsel %vm728, %v768, 0.0
      %787 = vadd.xlane.f32.xlu0 %v786
      %v788 = vpop.xlane.xlu0 %787
      %v789 = vsel %vm728, %v770, 0.0
      %790 = vadd.xlane.f32.xlu0 %v789
      %v791 = vpop.xlane.xlu0 %790
      %v792 = vsel %vm728, %v772, 0.0
      %793 = vadd.xlane.f32.xlu0 %v792
      %v794 = vpop.xlane.xlu0 %793
      %v795 = vsel %vm728, %v774, 0.0
      %796 = vadd.xlane.f32.xlu0 %v795
      %v797 = vpop.xlane.xlu0 %796
      %v798 = vsel %vm728, %v776, 0.0
      %799 = vadd.xlane.f32.xlu0 %v798
      %v800 = vpop.xlane.xlu0 %799
      %v801 = vpack.c.bf16 %v764, %v762
      %v802 = vpack.c.bf16 %v768, %v766
      %v803 = vpack.c.bf16 %v772, %v770
      %v804 = vpack.c.bf16 %v776, %v774
      %v805 = vld [vmem:[#allocation2] sm:$0xff]
      %v806 = vld [vmem:[#allocation2 + $0x8] sm:$0xff]
      %v807 = vld [vmem:[#allocation2 + $0x10] sm:$0xff]
      %v808 = vld [vmem:[#allocation2 + $0x18] sm:$0xff]
      %v810 = vsel %vm728, %v801, 0
      %v813 = vsel %vm728, %v802, 0
      %v816 = vsel %vm728, %v803, 0
      %v819 = vsel %vm728, %v804, 0
      %821 = vmatprep.subr.bf16.mxu0 0
      %822 = vmatpush1.bf16.msra.mxu0 %v805
      %823 = vmatprep.subr.bf16.mxu0 0
      %824 = vmatpush1.bf16.msra.mxu0 %v806
      %825 = vmatprep.subr.bf16.mxu0 0
      %826 = vmatpush1.bf16.msra.mxu0 %v807
      %827 = vmatprep.subr.bf16.mxu0 0
      %828 = vmatpush1.bf16.msra.mxu0 %v808
      %829 = vmatprep.subr.bf16.mxu0 0
      %830 = vmatpush1.bf16.msra.mxu0 0
      %831 = vmatprep.subr.bf16.mxu0 0
      %832 = vmatpush1.bf16.msra.mxu0 0
      %833 = vmatprep.subr.bf16.mxu0 0
      %834 = vmatpush1.bf16.msra.mxu0 0
      %835 = vmatprep.subr.bf16.mxu0 0
      %836 = vmatpush1.bf16.msra.mxu0 0
      %837 = vmatprep.subr.bf16.mxu0 0
      %838 = vmatpush1.bf16.msra.mxu0 0
      %839 = vmatprep.subr.bf16.mxu0 0
      %840 = vmatpush1.bf16.msra.mxu0 0
      %841 = vmatprep.subr.bf16.mxu0 0
      %842 = vmatpush1.bf16.msra.mxu0 0
      %843 = vmatprep.subr.bf16.mxu0 0
      %844 = vmatpush1.bf16.msra.mxu0 0
      %845 = vmatprep.subr.bf16.mxu0 0
      %846 = vmatpush1.bf16.msra.mxu0 0
      %847 = vmatprep.subr.bf16.mxu0 0
      %848 = vmatpush1.bf16.msra.mxu0 0
      %849 = vmatprep.subr.bf16.mxu0 0
      %850 = vmatpush1.bf16.msra.mxu0 0
      %851 = vmatprep.subr.bf16.mxu0 0
      %852 = vmatpush1.bf16.msra.mxu0 0
      %853 = vmatprep.mubr.bf16.mxu0 0
      %854 = vmatmul.mubr.bf16.gmra.mrb[0].mxu0 %v810
      %v855 = vpop.f32.mrb[0].mxu0
      %v856 = vadd.f32 0.0, %v855
      %v857 = vpop.f32.mrb[0].mxu0
      %v858 = vpop.f32.mrb[0].mxu0
      %v859 = vadd.f32 0.0, %v858
      %v860 = vpop.f32.mrb[0].mxu0
      %861 = vmatprep.mubr.bf16.mxu0 0
      %862 = vmatmul.mubr.bf16.gmra.mrb[0].mxu0 %v813
      %v863 = vpop.f32.mrb[0].mxu0
      %v864 = vadd.f32 0.0, %v863
      %v865 = vpop.f32.mrb[0].mxu0
      %v866 = vpop.f32.mrb[0].mxu0
      %v867 = vadd.f32 0.0, %v866
      %v868 = vpop.f32.mrb[0].mxu0
      %869 = vmatprep.mubr.bf16.mxu0 0
      %870 = vmatmul.mubr.bf16.gmra.mrb[0].mxu0 %v816
      %v871 = vpop.f32.mrb[0].mxu0
      %v872 = vadd.f32 0.0, %v871
      %v873 = vpop.f32.mrb[0].mxu0
      %v874 = vpop.f32.mrb[0].mxu0
      %v875 = vadd.f32 0.0, %v874
      %v876 = vpop.f32.mrb[0].mxu0
      %877 = vmatprep.mubr.bf16.mxu0 0
      %878 = vmatmul.mubr.bf16.gmra.mrb[0].mxu0 %v819
      %v879 = vpop.f32.mrb[0].mxu0
      %v880 = vadd.f32 0.0, %v879
      %v881 = vpop.f32.mrb[0].mxu0
      %v882 = vpop.f32.mrb[0].mxu0
      %v883 = vadd.f32 0.0, %v882
      %v884 = vpop.f32.mrb[0].mxu0
      %885 = vdwg.mxu0
      %v886 = vrcp.pop %v779
      %v887 = vrcp.pop %v782
      %v888 = vrcp.pop %v785
      %v889 = vrcp.pop %v788
      %v890 = vrcp.pop %v791
      %v891 = vrcp.pop %v794
      %v892 = vrcp.pop %v797
      %v893 = vrcp.pop %v800
      %v894 = vmul.f32 %v856, %v886
      %v895 = vmul.f32 %v859, %v887
      %v896 = vmul.f32 %v864, %v888
      %v897 = vmul.f32 %v867, %v889
      %v898 = vmul.f32 %v872, %v890
      %v899 = vmul.f32 %v875, %v891
      %v900 = vmul.f32 %v880, %v892
      %v901 = vmul.f32 %v883, %v893
      %902 = vst [vmem:[%s246] sm:$0xff] %v894
      %903 = vst [vmem:[%s246 + $0x8] sm:$0xff] %v895
      %904 = vst [vmem:[%s246 + $0x10] sm:$0xff] %v896
      %905 = vst [vmem:[%s246 + $0x18] sm:$0xff] %v897
      %906 = vst [vmem:[%s246 + $0x20] sm:$0xff] %v898
      %907 = vst [vmem:[%s246 + $0x28] sm:$0xff] %v899
      %908 = vst [vmem:[%s246 + $0x30] sm:$0xff] %v900
      %909 = vst [vmem:[%s246 + $0x38] sm:$0xff] %v901
      %s910 = smul.u32 8, %s21
      %p911 = scmp.lt.s32.totalorder %s20, 1
      %s912 = scalar_select %p911, %s20, 1
      %p913 = scmp.lt.s32.totalorder %s910, 7
      %s914 = scalar_select %p913, %s910, 7
      %s915 = smul.addr %s912, 8
      %s916 = sadd.s32 %s914, %s915
      %s917 = smul.addr %s916, 8
      %s918 = scalar_lea.vmem %s5, %s917
      // Predicated region
      $region45: #{bam_forward.1} parent=39 // pred_check
        %p919 = pneg %p158
      $region46: #{bam_forward.1} parent=39 // pred_check_branch
        %921 = sbr.rel (%p919) target = $region48
      $region47: #{bam_forward.1} parent=39 // pred_region
        %s922 = smul.u32 8, %s21
      $region48: #{bam_forward.1} parent=39 // pred_fallthru
        _
    $region40: #{bam_forward.1} parent=5 // pred_fallthru
      _
    %p923 = scmp.le.s32.totalorder 2, %s11
    // Predicated region
    $region49: #{bam_forward.1} parent=5 // pred_check
      %p924 = pneg %p923
    $region50: #{bam_forward.1} parent=5 // pred_check_branch
      %926 = sbr.rel (%p924) target = $region52
    $region51: #{bam_forward.1} parent=5 // pred_region
      %s927 = ssub.s32 %s11, 2
      // Predicated region
      $region53: #{bam_forward.1} parent=51 // pred_check
        %p928 = pneg %p164
      $region54: #{bam_forward.1} parent=51 // pred_check_branch
        %930 = sbr.rel (%p928) target = $region56
      $region55: #{bam_forward.1} parent=51 // pred_region
        %s931 = smul.u32 8, %s23
        %p932 = scmp.lt.s32.totalorder %s22, 1
        %s933 = scalar_select %p932, %s22, 1
        %p934 = scmp.lt.s32.totalorder %s931, 7
        %s935 = scalar_select %p934, %s931, 7
        %s936 = smul.addr %s933, 8
        %s937 = sadd.s32 %s935, %s936
        %s938 = smul.addr %s937, 8
        %s939 = scalar_lea.vmem %s5, %s938
      $region56: #{bam_forward.1} parent=51 // pred_fallthru
        _
    $region52: #{bam_forward.1} parent=5 // pred_fallthru
      _
  $region6: #{bam_forward.1} parent=0 // loop_footer
    %s15 = sadd.s32 1, %s11
  $region7: #{bam_forward.1} parent=0 // loop_footer_branch
    %10 = sbr.rel target = $region3
  $region8: #{bam_forward.1} parent=0 // loop_exit
    _

</llo_original>
